<compile_context>
chip_gen: v7x
topology: tpu7x:2x2x1
jax: 0.10.0
libtpu: 0.0.40
codegen_flags: <defaults>
</compile_context>

<pallas_src>
import jax
import jax.numpy as jnp
from jax import lax
from jax.experimental import pallas as pl
from jax.experimental.pallas import tpu as pltpu

IN_FEATURES = 8
BATCH = 2
OUT_ROWS = 2 * BATCH   # (2, 16) -> (4, 8) row-major reshape

# x @ W.T with W in torch (out_features, in_features) layout:
# contract x's dim 1 against w's dim 1.
_DOT_T = (((1,), (1,)), ((), ()))


def model_kernel(x_ref, w_ref, b_ref, z1_ref, out_ref):
    x = x_ref[...]        # (2, 8)
    w = w_ref[...]        # (8, 8)  torch layout (out, in)
    b = b_ref[...]        # (1, 8)
    z1 = z1_ref[...]      # (1, 8)

    # y1 = self.linear(x1)  ==  x @ W.T + b
    y1 = lax.dot_general(x, w, _DOT_T,
                         preferred_element_type=jnp.float32) + b   # (2, 8)

    # k1 = z1 + y1
    # TODO(synk): original z1 has shape (1, 4) which cannot broadcast with
    #             (2, 8); we use (1, 8) so the add is well defined.
    k1 = z1 + y1                                                    # (2, 8)

    # y2 = cat((k1, y1), dim=1) -> (2, 16); element-order-preserving reshape
    # to (4, 8) so the Linear(8, 8) layers remain applicable.
    # TODO(synk): original reshape target (1, 16) / transpose(1, 2) /
    #             flatten(start_dim=1) are invalid for these shapes; on a 2-D
    #             tensor they reduce to the row-major (2, 16) -> (4, 8) reshape.
    y5 = jnp.stack([k1, y1], axis=1).reshape(OUT_ROWS, IN_FEATURES)  # (4, 8)

    # y6 = self.linear(y5); y7 = self.linear(y6)   (same weights/bias reused)
    y6 = lax.dot_general(y5, w, _DOT_T,
                         preferred_element_type=jnp.float32) + b     # (4, 8)
    y7 = lax.dot_general(y6, w, _DOT_T,
                         preferred_element_type=jnp.float32) + b     # (4, 8)

    out_ref[...] = y7.astype(out_ref.dtype)


@jax.jit
def model_forward(x, w, b, z1):
    """x: (2, 8) f32, w: (8, 8) f32 (torch layout: out x in),
       b: (1, 8) f32, z1: (1, 8) f32.  Single fused custom call, no prep."""
    vmem = pl.BlockSpec(memory_space=pltpu.MemorySpace.VMEM)
    return pl.pallas_call(
        model_kernel,
        out_shape=jax.ShapeDtypeStruct((OUT_ROWS, IN_FEATURES), jnp.float32),
        in_specs=[vmem, vmem, vmem, vmem],
        out_specs=vmem,
    )(x, w, b, z1)


if __name__ == "__main__":
    key = jax.random.PRNGKey(0)
    k_x, k_w, k_b, k_z = jax.random.split(key, 4)

    # Deterministic parameter init (torch.nn.Linear(8, 8) shapes/bounds).
    bound = 1.0 / (IN_FEATURES ** 0.5)
    w = jax.random.uniform(k_w, (IN_FEATURES, IN_FEATURES),
                           minval=-bound, maxval=bound, dtype=jnp.float32)
    b = jax.random.uniform(k_b, (1, IN_FEATURES),
                           minval=-bound, maxval=bound, dtype=jnp.float32)

    # Example input x1 ~ randn(2, 8).
    x = jax.random.normal(k_x, (BATCH, IN_FEATURES), dtype=jnp.float32)

    # z1 ~ U[0, 1): torch.rand equivalent, drawn in the host wrapper.
    # TODO(synk): reference draws fresh (1, 4) randomness inside forward();
    #             we pass it in (widened to (1, 8)) — thread a new key per
    #             call if per-invocation randomness is required.
    z1 = jax.random.uniform(k_z, (1, IN_FEATURES), dtype=jnp.float32)

    out = model_forward(x, w, b, z1)
    jax.block_until_ready(out)
    assert out.shape == (OUT_ROWS, IN_FEATURES)
    assert bool(jnp.all(jnp.isfinite(out)))
    print("KERNEL_OK")
</pallas_src>

<mosaic_0001>
module attributes {stable_mosaic.version = 11 : i64} {
  func.func @model_kernel(%arg0: memref<2x8xf32, #tpu.memory_space<vmem>>, %arg1: memref<8x8xf32, #tpu.memory_space<vmem>>, %arg2: memref<1x8xf32, #tpu.memory_space<vmem>>, %arg3: memref<1x8xf32, #tpu.memory_space<vmem>>, %arg4: memref<4x8xf32, #tpu.memory_space<vmem>>) attributes {dimension_semantics = [], scalar_prefetch = 0 : i64, scratch_operands = 0 : i64, tpu.core_type = #tpu.core_type<tc>} {
    %c0 = arith.constant 0 : index
    %c0_0 = arith.constant 0 : index
    %0 = vector.load %arg0[%c0, %c0_0] : memref<2x8xf32, #tpu.memory_space<vmem>>, vector<2x8xf32>
    %c0_1 = arith.constant 0 : index
    %c0_2 = arith.constant 0 : index
    %1 = vector.load %arg1[%c0_1, %c0_2] : memref<8x8xf32, #tpu.memory_space<vmem>>, vector<8x8xf32>
    %c0_3 = arith.constant 0 : index
    %c0_4 = arith.constant 0 : index
    %2 = vector.load %arg2[%c0_3, %c0_4] : memref<1x8xf32, #tpu.memory_space<vmem>>, vector<1x8xf32>
    %c0_5 = arith.constant 0 : index
    %c0_6 = arith.constant 0 : index
    %3 = vector.load %arg3[%c0_5, %c0_6] : memref<1x8xf32, #tpu.memory_space<vmem>>, vector<1x8xf32>
    %cst = arith.constant dense<0.000000e+00> : vector<2x8xf32>
    %4 = tpu.matmul %0, %1, %cst {dimension_numbers = #tpu.dot_dimension_numbers<[1], [1], [0], [0], [0, 0, 1, 0], [], []>} : vector<2x8xf32>, vector<8x8xf32>, vector<2x8xf32> -> vector<2x8xf32>
    %5 = vector.broadcast %2 : vector<1x8xf32> to vector<2x8xf32>
    %6 = arith.addf %4, %5 : vector<2x8xf32>
    %7 = vector.broadcast %3 : vector<1x8xf32> to vector<2x8xf32>
    %8 = arith.addf %7, %6 : vector<2x8xf32>
    %9 = vector.shape_cast %8 : vector<2x8xf32> to vector<2x1x8xf32>
    %10 = vector.shape_cast %6 : vector<2x8xf32> to vector<2x1x8xf32>
    %11 = tpu.concatenate %9, %10 in 1 : vector<2x1x8xf32>, vector<2x1x8xf32> -> vector<2x2x8xf32>
    %12 = vector.shape_cast %11 : vector<2x2x8xf32> to vector<4x8xf32>
    %cst_7 = arith.constant dense<0.000000e+00> : vector<4x8xf32>
    %13 = tpu.matmul %12, %1, %cst_7 {dimension_numbers = #tpu.dot_dimension_numbers<[1], [1], [0], [0], [0, 0, 1, 0], [], []>} : vector<4x8xf32>, vector<8x8xf32>, vector<4x8xf32> -> vector<4x8xf32>
    %14 = vector.broadcast %2 : vector<1x8xf32> to vector<4x8xf32>
    %15 = arith.addf %13, %14 : vector<4x8xf32>
    %cst_8 = arith.constant dense<0.000000e+00> : vector<4x8xf32>
    %16 = tpu.matmul %15, %1, %cst_8 {dimension_numbers = #tpu.dot_dimension_numbers<[1], [1], [0], [0], [0, 0, 1, 0], [], []>} : vector<4x8xf32>, vector<8x8xf32>, vector<4x8xf32> -> vector<4x8xf32>
    %17 = vector.broadcast %2 : vector<1x8xf32> to vector<4x8xf32>
    %18 = arith.addf %16, %17 : vector<4x8xf32>
    %c0_9 = arith.constant 0 : index
    %c0_10 = arith.constant 0 : index
    %19 = vector.load %arg4[%c0_9, %c0_10] : memref<4x8xf32, #tpu.memory_space<vmem>>, vector<4x8xf32>
    tpu.vector_store %arg4[%c0_9, %c0_10], %18 {strides = array<i32>} : memref<4x8xf32, #tpu.memory_space<vmem>>, vector<4x8xf32>,
    return
  }
}

</mosaic_0001>

<llo_original>
// kernel: model_forward.1
$region0: #{model_forward.1}
  #allocation0 [shape = 'u32[]', space=smem, size = 0x4, offset = 0x4, fixed_abs, tag = 'smem constant byte address 0x4 - core index']
  #allocation1 [shape = 'u32[144,128]{1,0:T(1,128)}', space=vmem, size = 0x12000, scoped, tag = 'internal scratch']
  %s0 = inlined_call_operand.hbm [shape: f32[2,8], index: 0, kind: input, shape index: {}]
  %s1 = inlined_call_operand.hbm [shape: f32[8,8], index: 1, kind: input, shape index: {}]
  %s2 = inlined_call_operand.vmem [shape: f32[1,8], index: 2, kind: input, shape index: {}]
  %s3 = inlined_call_operand.vmem [shape: f32[1,8], index: 3, kind: input, shape index: {}]
  %s4 = inlined_call_operand.hbm [shape: f32[4,8], index: 4, kind: output, shape index: {}]
  %s5 = sld [smem:[#allocation0]]
  $region34: #{model_forward.1} parent=0
    _
  %s7 = ssub.s32 1, %s5
  %s8 = scalar_select 0, %s7, %s5
  $region1: #{model_forward.1} parent=0
    #allocation2 [shape = 'u8[1024]{0}', space=vmem, size = 0x400, scoped, tag = 'input window, operand 0, single buffered']
    #allocation3 [shape = 's32[1]{0}', space=sflag, size = 0x4, scoped, tag = 'scoped memory for model_forward.1']
    #allocation4 [shape = 's32[1]{0}', space=sflag, size = 0x4, scoped, tag = 'scoped memory for model_forward.1']
    #allocation5 [shape = 'u8[4096]{0}', space=vmem, size = 0x1000, scoped, tag = 'input window, operand 1, single buffered']
    #allocation6 [shape = 's32[1]{0}', space=sflag, size = 0x4, scoped, tag = 'scoped memory for model_forward.1']
    #allocation7 [shape = 'u8[2048]{0}', space=vmem, size = 0x800, scoped, tag = 'output window, operand 0, single buffered']
    %9 = vsyncpa [#allocation3], 0
    %10 = vsyncpa [#allocation6], 0
    %11 = vsyncpa [#allocation4], 0
    // Predicated region
    $region2: #{model_forward.1} parent=1 // pred_check
      _
    $region3: #{model_forward.1} parent=1 // pred_check_branch
      %13 = sbr.rel (0) target = $region5
    $region4: #{model_forward.1} parent=1 // pred_region
      %s15 = ssub.s32 32, 32
      %16 = vsyncadd [#allocation3], %s15
      %s18 = sshll.u32 [#allocation2], 4
      %s19 = int_to_ptr.vmem [resolvable:$true] %s18
      %21 = dma.hbm_to_vmem [thread:$0]  %s0, 32, %s19, [#allocation3]
    $region5: #{model_forward.1} parent=1 // pred_fallthru
      _
    // Predicated region
    $region6: #{model_forward.1} parent=1 // pred_check
      _
    $region7: #{model_forward.1} parent=1 // pred_check_branch
      %23 = sbr.rel (0) target = $region9
    $region8: #{model_forward.1} parent=1 // pred_region
      %s25 = ssub.s32 128, 128
      %26 = vsyncadd [#allocation6], %s25
      %s28 = sshll.u32 [#allocation5], 4
      %s29 = int_to_ptr.vmem [resolvable:$true] %s28
      %31 = dma.hbm_to_vmem [thread:$0]  %s1, 128, %s29, [#allocation6]
    $region9: #{model_forward.1} parent=1 // pred_fallthru
      _
    // Predicated region
    $region10: #{model_forward.1} parent=1 // pred_check
      _
    $region11: #{model_forward.1} parent=1 // pred_check_branch
      %33 = sbr.rel (0) target = $region13
    $region12: #{model_forward.1} parent=1 // pred_region
      _
    $region13: #{model_forward.1} parent=1 // pred_fallthru
      _
    // Predicated region
    $region14: #{model_forward.1} parent=1 // pred_check
      _
    $region15: #{model_forward.1} parent=1 // pred_check_branch
      %35 = sbr.rel (0) target = $region17
    $region16: #{model_forward.1} parent=1 // pred_region
      _
    $region17: #{model_forward.1} parent=1 // pred_fallthru
      _
    // Predicated region
    $region18: #{model_forward.1} parent=1 // pred_check
      _
    $region19: #{model_forward.1} parent=1 // pred_check_branch
      %37 = sbr.rel (0) target = $region21
    $region20: #{model_forward.1} parent=1 // pred_region
      %38 = dma.done [#allocation3], 32
    $region21: #{model_forward.1} parent=1 // pred_fallthru
      _
    // Predicated region
    $region22: #{model_forward.1} parent=1 // pred_check
      _
    $region23: #{model_forward.1} parent=1 // pred_check_branch
      %40 = sbr.rel (0) target = $region25
    $region24: #{model_forward.1} parent=1 // pred_region
      %41 = dma.done [#allocation6], 128
    $region25: #{model_forward.1} parent=1 // pred_fallthru
      _
    %v42 = vld [vmem:[#allocation2] sm:$0x3]
    %v43 = vld [vmem:[#allocation5] sm:$0xff]
    %v44 = vld [vmem:[%s2] sm:$0x1]
    %v45 = vld [vmem:[%s3] sm:$0x1]
    %v47 = vlaneseq
    %v48 = vshrl.u32 %v47, 7
    %v49 = vsub.s32 0, %v48
    %v50 = vrot.slane %v44, %v49
    %vm52 = vcmask 64512
    %v54 = vsel %vm52, %v42, 0
    %v57 = vsel %vm52, %v43, 0
    %59 = vmatprep.subr.mxu0 0.0
    %60 = vmatpush1.xpose.msra.mxu0 %v57
    %61 = vmatprep.subr.mxu0 0.0
    %62 = vmatpush1.xpose.msra.mxu0 0.0
    %63 = vmatprep.subr.mxu0 0.0
    %64 = vmatpush1.xpose.msra.mxu0 0.0
    %65 = vmatprep.subr.mxu0 0.0
    %66 = vmatpush1.xpose.msra.mxu0 0.0
    %67 = vmatprep.subr.mxu0 0.0
    %68 = vmatpush1.xpose.msra.mxu0 0.0
    %69 = vmatprep.subr.mxu0 0.0
    %70 = vmatpush1.xpose.msra.mxu0 0.0
    %71 = vmatprep.subr.mxu0 0.0
    %72 = vmatpush1.xpose.msra.mxu0 0.0
    %73 = vmatprep.subr.mxu0 0.0
    %74 = vmatpush1.xpose.msra.mxu0 0.0
    %75 = vmatprep.subr.mxu0 0.0
    %76 = vmatpush1.xpose.msra.mxu0 0.0
    %77 = vmatprep.subr.mxu0 0.0
    %78 = vmatpush1.xpose.msra.mxu0 0.0
    %79 = vmatprep.subr.mxu0 0.0
    %80 = vmatpush1.xpose.msra.mxu0 0.0
    %81 = vmatprep.subr.mxu0 0.0
    %82 = vmatpush1.xpose.msra.mxu0 0.0
    %83 = vmatprep.subr.mxu0 0.0
    %84 = vmatpush1.xpose.msra.mxu0 0.0
    %85 = vmatprep.subr.mxu0 0.0
    %86 = vmatpush1.xpose.msra.mxu0 0.0
    %87 = vmatprep.subr.mxu0 0.0
    %88 = vmatpush1.xpose.msra.mxu0 0.0
    %89 = vmatprep.subr.mxu0 0.0
    %90 = vmatpush1.xpose.msra.mxu0 0.0
    %91 = vmatprep.subr.mxu0 0.0
    %92 = vmatpush1.xpose.msra.mxu0 0.0
    %93 = vmatprep.subr.mxu0 0.0
    %94 = vmatpush1.xpose.msra.mxu0 0.0
    %95 = vmatprep.subr.mxu0 0.0
    %96 = vmatpush1.xpose.msra.mxu0 0.0
    %97 = vmatprep.subr.mxu0 0.0
    %98 = vmatpush1.xpose.msra.mxu0 0.0
    %99 = vmatprep.subr.mxu0 0.0
    %100 = vmatpush1.xpose.msra.mxu0 0.0
    %101 = vmatprep.subr.mxu0 0.0
    %102 = vmatpush1.xpose.msra.mxu0 0.0
    %103 = vmatprep.subr.mxu0 0.0
    %104 = vmatpush1.xpose.msra.mxu0 0.0
    %105 = vmatprep.subr.mxu0 0.0
    %106 = vmatpush1.xpose.msra.mxu0 0.0
    %107 = vmatprep.subr.mxu0 0.0
    %108 = vmatpush1.xpose.msra.mxu0 0.0
    %109 = vmatprep.subr.mxu0 0.0
    %110 = vmatpush1.xpose.msra.mxu0 0.0
    %111 = vmatprep.subr.mxu0 0.0
    %112 = vmatpush1.xpose.msra.mxu0 0.0
    %113 = vmatprep.subr.mxu0 0.0
    %114 = vmatpush1.xpose.msra.mxu0 0.0
    %115 = vmatprep.subr.mxu0 0.0
    %116 = vmatpush1.xpose.msra.mxu0 0.0
    %117 = vmatprep.subr.mxu0 0.0
    %118 = vmatpush1.xpose.msra.mxu0 0.0
    %119 = vmatprep.subr.mxu0 0.0
    %120 = vmatpush1.xpose.msra.mxu0 0.0
    %121 = vmatprep.subr.mxu0 0.0
    %122 = vmatpush1.xpose.msra.mxu0 0.0
    %123 = vmatprep.mubr.f32.mxu0 0.0
    %124 = vmatmul.mubr.f32.gmra.mrb[0].mxu0 %v54
    %v125 = vpop.f32.mrb[0].mxu0
    %v126 = vadd.f32 %v50, %v125
    %v127 = vpop.f32.mrb[0].mxu0
    %128 = vdwg.mxu0
    %v130 = vlaneseq
    %v131 = vshrl.u32 %v130, 7
    %v132 = vsub.s32 0, %v131
    %v133 = vrot.slane %v45, %v132
    %v135 = vadd.f32 %v133, %v126
    %v138 = vunpack.c.l.s4 1966171168
    %v139 = vunpack.c.0.s8 %v138
    %v140 = vlaneseq
    %v141 = vshrl.u32 %v140, 7
    %v142 = vsub.s32 %v139, %v141
    %v143 = vrot.slane %v135, %v142
    %v144 = vcombine.high %v143, %v143
    %v146 = vunpack.c.l.s4 1966171168
    %v147 = vunpack.c.0.s8 %v146
    %v148 = vlaneseq
    %v149 = vshrl.u32 %v148, 7
    %v150 = vsub.s32 %v147, %v149
    %v151 = vrot.slane %v143, %v150
    %v153 = vunpack.c.l.s4 1966171168
    %v154 = vunpack.c.0.s8 %v153
    %v155 = vlaneseq
    %v156 = vshrl.u32 %v155, 7
    %v157 = vsub.s32 %v154, %v156
    %v158 = vrot.slane %v144, %v157
    %v163 = vunpack.c.l.s4 1966171168
    %v164 = vunpack.c.0.s8 %v163
    %v165 = vlaneseq
    %v166 = vshrl.u32 %v165, 7
    %v167 = vsub.s32 %v164, %v166
    %v168 = vrot.slane %v126, %v167
    %v169 = vcombine.high %v168, %v168
    %v171 = vunpack.c.l.s4 1966171168
    %v172 = vunpack.c.0.s8 %v171
    %v173 = vlaneseq
    %v174 = vshrl.u32 %v173, 7
    %v175 = vsub.s32 %v172, %v174
    %v176 = vrot.slane %v168, %v175
    %v178 = vunpack.c.l.s4 1966171168
    %v179 = vunpack.c.0.s8 %v178
    %v180 = vlaneseq
    %v181 = vshrl.u32 %v180, 7
    %v182 = vsub.s32 %v179, %v181
    %v183 = vrot.slane %v169, %v182
    %v184 = vlaneseq
    %v185 = vshrl.u32 %v184, 7
    %v186 = vsub.s32 0, %v185
    %v187 = vrot.slane %v176, %v186
    %v188 = vlaneseq
    %v189 = vshrl.u32 %v188, 7
    %v190 = vsub.s32 0, %v189
    %v191 = vrot.slane %v183, %v190
    %vm194 = vcmask 1040384
    %v195 = vsel %vm194, %v151, %v187
    %v196 = vsel %vm194, %v158, %v191
    %v199 = vcombine.low %v195, %v196
    %v201 = vunpack.c.l.s4 1983009808
    %v202 = vunpack.c.0.s8 %v201
    %v203 = vlaneseq
    %v204 = vshrl.u32 %v203, 7
    %v205 = vsub.s32 %v202, %v204
    %v206 = vrot.slane %v199, %v205
    %v207 = vsel %vm52, %v206, 0
    %209 = vmatprep.subr.mxu0 0.0
    %210 = vmatpush1.xpose.msra.mxu0 %v57
    %211 = vmatprep.subr.mxu0 0.0
    %212 = vmatpush1.xpose.msra.mxu0 0.0
    %213 = vmatprep.subr.mxu0 0.0
    %214 = vmatpush1.xpose.msra.mxu0 0.0
    %215 = vmatprep.subr.mxu0 0.0
    %216 = vmatpush1.xpose.msra.mxu0 0.0
    %217 = vmatprep.subr.mxu0 0.0
    %218 = vmatpush1.xpose.msra.mxu0 0.0
    %219 = vmatprep.subr.mxu0 0.0
    %220 = vmatpush1.xpose.msra.mxu0 0.0
    %221 = vmatprep.subr.mxu0 0.0
    %222 = vmatpush1.xpose.msra.mxu0 0.0
    %223 = vmatprep.subr.mxu0 0.0
    %224 = vmatpush1.xpose.msra.mxu0 0.0
    %225 = vmatprep.subr.mxu0 0.0
    %226 = vmatpush1.xpose.msra.mxu0 0.0
    %227 = vmatprep.subr.mxu0 0.0
    %228 = vmatpush1.xpose.msra.mxu0 0.0
    %229 = vmatprep.subr.mxu0 0.0
    %230 = vmatpush1.xpose.msra.mxu0 0.0
    %231 = vmatprep.subr.mxu0 0.0
    %232 = vmatpush1.xpose.msra.mxu0 0.0
    %233 = vmatprep.subr.mxu0 0.0
    %234 = vmatpush1.xpose.msra.mxu0 0.0
    %235 = vmatprep.subr.mxu0 0.0
    %236 = vmatpush1.xpose.msra.mxu0 0.0
    %237 = vmatprep.subr.mxu0 0.0
    %238 = vmatpush1.xpose.msra.mxu0 0.0
    %239 = vmatprep.subr.mxu0 0.0
    %240 = vmatpush1.xpose.msra.mxu0 0.0
    %241 = vmatprep.subr.mxu0 0.0
    %242 = vmatpush1.xpose.msra.mxu0 0.0
    %243 = vmatprep.subr.mxu0 0.0
    %244 = vmatpush1.xpose.msra.mxu0 0.0
    %245 = vmatprep.subr.mxu0 0.0
    %246 = vmatpush1.xpose.msra.mxu0 0.0
    %247 = vmatprep.subr.mxu0 0.0
    %248 = vmatpush1.xpose.msra.mxu0 0.0
    %249 = vmatprep.subr.mxu0 0.0
    %250 = vmatpush1.xpose.msra.mxu0 0.0
    %251 = vmatprep.subr.mxu0 0.0
    %252 = vmatpush1.xpose.msra.mxu0 0.0
    %253 = vmatprep.subr.mxu0 0.0
    %254 = vmatpush1.xpose.msra.mxu0 0.0
    %255 = vmatprep.subr.mxu0 0.0
    %256 = vmatpush1.xpose.msra.mxu0 0.0
    %257 = vmatprep.subr.mxu0 0.0
    %258 = vmatpush1.xpose.msra.mxu0 0.0
    %259 = vmatprep.subr.mxu0 0.0
    %260 = vmatpush1.xpose.msra.mxu0 0.0
    %261 = vmatprep.subr.mxu0 0.0
    %262 = vmatpush1.xpose.msra.mxu0 0.0
    %263 = vmatprep.subr.mxu0 0.0
    %264 = vmatpush1.xpose.msra.mxu0 0.0
    %265 = vmatprep.subr.mxu0 0.0
    %266 = vmatpush1.xpose.msra.mxu0 0.0
    %267 = vmatprep.subr.mxu0 0.0
    %268 = vmatpush1.xpose.msra.mxu0 0.0
    %269 = vmatprep.subr.mxu0 0.0
    %270 = vmatpush1.xpose.msra.mxu0 0.0
    %271 = vmatprep.subr.mxu0 0.0
    %272 = vmatpush1.xpose.msra.mxu0 0.0
    %273 = vmatprep.mubr.f32.mxu0 0.0
    %274 = vmatmul.mubr.f32.gmra.mrb[0].mxu0 %v207
    %v275 = vpop.f32.mrb[0].mxu0
    %v276 = vadd.f32 %v50, %v275
    %v277 = vpop.f32.mrb[0].mxu0
    %278 = vdwg.mxu0
    %v280 = vsel %vm52, %v276, 0
    %282 = vmatprep.subr.mxu0 0.0
    %283 = vmatpush1.xpose.msra.mxu0 %v57
    %284 = vmatprep.subr.mxu0 0.0
    %285 = vmatpush1.xpose.msra.mxu0 0.0
    %286 = vmatprep.subr.mxu0 0.0
    %287 = vmatpush1.xpose.msra.mxu0 0.0
    %288 = vmatprep.subr.mxu0 0.0
    %289 = vmatpush1.xpose.msra.mxu0 0.0
    %290 = vmatprep.subr.mxu0 0.0
    %291 = vmatpush1.xpose.msra.mxu0 0.0
    %292 = vmatprep.subr.mxu0 0.0
    %293 = vmatpush1.xpose.msra.mxu0 0.0
    %294 = vmatprep.subr.mxu0 0.0
    %295 = vmatpush1.xpose.msra.mxu0 0.0
    %296 = vmatprep.subr.mxu0 0.0
    %297 = vmatpush1.xpose.msra.mxu0 0.0
    %298 = vmatprep.subr.mxu0 0.0
    %299 = vmatpush1.xpose.msra.mxu0 0.0
    %300 = vmatprep.subr.mxu0 0.0
    %301 = vmatpush1.xpose.msra.mxu0 0.0
    %302 = vmatprep.subr.mxu0 0.0
    %303 = vmatpush1.xpose.msra.mxu0 0.0
    %304 = vmatprep.subr.mxu0 0.0
    %305 = vmatpush1.xpose.msra.mxu0 0.0
    %306 = vmatprep.subr.mxu0 0.0
    %307 = vmatpush1.xpose.msra.mxu0 0.0
    %308 = vmatprep.subr.mxu0 0.0
    %309 = vmatpush1.xpose.msra.mxu0 0.0
    %310 = vmatprep.subr.mxu0 0.0
    %311 = vmatpush1.xpose.msra.mxu0 0.0
    %312 = vmatprep.subr.mxu0 0.0
    %313 = vmatpush1.xpose.msra.mxu0 0.0
    %314 = vmatprep.subr.mxu0 0.0
    %315 = vmatpush1.xpose.msra.mxu0 0.0
    %316 = vmatprep.subr.mxu0 0.0
    %317 = vmatpush1.xpose.msra.mxu0 0.0
    %318 = vmatprep.subr.mxu0 0.0
    %319 = vmatpush1.xpose.msra.mxu0 0.0
    %320 = vmatprep.subr.mxu0 0.0
    %321 = vmatpush1.xpose.msra.mxu0 0.0
    %322 = vmatprep.subr.mxu0 0.0
    %323 = vmatpush1.xpose.msra.mxu0 0.0
    %324 = vmatprep.subr.mxu0 0.0
    %325 = vmatpush1.xpose.msra.mxu0 0.0
    %326 = vmatprep.subr.mxu0 0.0
    %327 = vmatpush1.xpose.msra.mxu0 0.0
    %328 = vmatprep.subr.mxu0 0.0
    %329 = vmatpush1.xpose.msra.mxu0 0.0
    %330 = vmatprep.subr.mxu0 0.0
    %331 = vmatpush1.xpose.msra.mxu0 0.0
    %332 = vmatprep.subr.mxu0 0.0
    %333 = vmatpush1.xpose.msra.mxu0 0.0
    %334 = vmatprep.subr.mxu0 0.0
    %335 = vmatpush1.xpose.msra.mxu0 0.0
    %336 = vmatprep.subr.mxu0 0.0
    %337 = vmatpush1.xpose.msra.mxu0 0.0
    %338 = vmatprep.subr.mxu0 0.0
    %339 = vmatpush1.xpose.msra.mxu0 0.0
    %340 = vmatprep.subr.mxu0 0.0
    %341 = vmatpush1.xpose.msra.mxu0 0.0
    %342 = vmatprep.subr.mxu0 0.0
    %343 = vmatpush1.xpose.msra.mxu0 0.0
    %344 = vmatprep.subr.mxu0 0.0
    %345 = vmatpush1.xpose.msra.mxu0 0.0
    %346 = vmatprep.mubr.f32.mxu0 0.0
    %347 = vmatmul.mubr.f32.gmra.mrb[0].mxu0 %v280
    %v348 = vpop.f32.mrb[0].mxu0
    %v349 = vadd.f32 %v50, %v348
    %v350 = vpop.f32.mrb[0].mxu0
    %351 = vdwg.mxu0
    %vm352 = vcmask 60416
    %353 = vst.msk [vmem:[#allocation7] sm:$0xf] %vm352, %v349
    // Predicated region
    $region26: #{model_forward.1} parent=1 // pred_check
      _
    $region27: #{model_forward.1} parent=1 // pred_check_branch
      %355 = sbr.rel (0) target = $region29
    $region28: #{model_forward.1} parent=1 // pred_region
      %s357 = ssub.s32 64, 64
      %358 = vsyncadd [#allocation4], %s357
      %s360 = sshll.u32 [#allocation7], 4
      %s361 = int_to_ptr.vmem [resolvable:$true] %s360
      %363 = dma.vmem_to_hbm [thread:$0]  %s361, 64, %s4, [#allocation4]
    $region29: #{model_forward.1} parent=1 // pred_fallthru
      _
    // Predicated region
    $region30: #{model_forward.1} parent=1 // pred_check
      _
    $region31: #{model_forward.1} parent=1 // pred_check_branch
      %365 = sbr.rel (0) target = $region33
    $region32: #{model_forward.1} parent=1 // pred_region
      %366 = dma.done [#allocation4], 64
    $region33: #{model_forward.1} parent=1 // pred_fallthru
      _
    %367 = vsyncpa [#allocation3], 1
    %368 = vsyncpa [#allocation6], 1
    %369 = vsyncpa [#allocation4], 1

</llo_original>
